<compile_context>
chip_gen: v5e
topology: v5e:2x2
jax: 0.10.0
libtpu: 0.0.40
codegen_flags: <defaults>
</compile_context>

<pallas_src>
import functools

import jax
import jax.numpy as jnp
from jax.experimental import pallas as pl
from jax.experimental.pallas import tpu as pltpu


LOG_STD_MIN = -20.0
LOG_STD_MAX = 2.0

_LANES = 128        # TPU lane width: fused head / output last dim padded to this
_SUBLANES = 8       # f32 sublane granularity for the batch tile
_MAX_TILE_B = 256   # batch rows per grid step (large enough to hide ~0.35us/step)


def _round_up(x, m):
    return ((x + m - 1) // m) * m


def _policy_kernel(x_ref, w1_ref, b1_ref, w2_ref, b2_ref, wh_ref, bh_ref,
                   out_ref, *, num_actions):
    """Whole MLP fused on-chip: 3 MXU matmuls, f32 accumulation.

    out_ref is a single lane-dense (TB, 128) slab:
      cols [0, A)    -> mean
      cols [A, 2A)   -> log_std (clamped)
      cols [2A, 128) -> zero padding (weight/bias padding is zero)
    """
    x = x_ref[...]

    h1 = jnp.dot(x, w1_ref[...], preferred_element_type=jnp.float32)
    h1 = jnp.maximum(h1 + b1_ref[...].astype(jnp.float32), 0.0)          # relu

    h2 = jnp.dot(h1.astype(w2_ref.dtype), w2_ref[...],
                 preferred_element_type=jnp.float32)
    h2 = jnp.maximum(h2 + b2_ref[...].astype(jnp.float32), 0.0)          # relu

    # Fused mean || log_std head: one matmul instead of two.
    head = jnp.dot(h2.astype(wh_ref.dtype), wh_ref[...],
                   preferred_element_type=jnp.float32)
    head = head + bh_ref[...].astype(jnp.float32)

    # Clamp only the log_std half (columns [A, 2A)) — cheap VPU mask.
    lane = jax.lax.broadcasted_iota(jnp.int32, head.shape, 1)
    is_log_std = (lane >= num_actions) & (lane < 2 * num_actions)
    head = jnp.where(is_log_std,
                     jnp.clip(head, LOG_STD_MIN, LOG_STD_MAX),
                     head)

    out_ref[...] = head.astype(out_ref.dtype)


@functools.partial(jax.jit, static_argnames=("num_actions",))
def policy_network_forward(state, params, *, num_actions):
    """Pallas-TPU forward of PolicyNetwork: returns (mean, log_std)."""
    w1, b1, w2, b2, wh, bh = params
    batch, num_inputs = state.shape
    hidden = w1.shape[1]
    out_w = wh.shape[1]                       # 128-padded fused head width

    # --- batch padding / tiling --------------------------------------------
    tile_b = min(_MAX_TILE_B, _round_up(batch, _SUBLANES))
    padded_batch = _round_up(batch, tile_b)
    x = state.astype(w1.dtype)
    if padded_batch != batch:
        x = jnp.pad(x, ((0, padded_batch - batch), (0, 0)))

    grid = (padded_batch // tile_b,)
    const = lambda i: (0, 0)                  # weights resident across the grid

    out = pl.pallas_call(
        functools.partial(_policy_kernel, num_actions=num_actions),
        out_shape=jax.ShapeDtypeStruct((padded_batch, out_w), jnp.float32),
        grid=grid,
        in_specs=[
            pl.BlockSpec((tile_b, num_inputs), lambda i: (i, 0)),   # x tile
            pl.BlockSpec((num_inputs, hidden), const),              # w1
            pl.BlockSpec((1, hidden), const),                       # b1
            pl.BlockSpec((hidden, hidden), const),                  # w2
            pl.BlockSpec((1, hidden), const),                       # b2
            pl.BlockSpec((hidden, out_w), const),                   # fused head W
            pl.BlockSpec((1, out_w), const),                        # fused head b
        ],
        out_specs=pl.BlockSpec((tile_b, out_w), lambda i: (i, 0)),
        compiler_params=pltpu.CompilerParams(
            dimension_semantics=("parallel",),   # megacore / 2-TC split on v7x
        ),
    )(x, w1, b1, w2, b2, wh, bh)

    mean = out[:batch, :num_actions]
    log_std = out[:batch, num_actions:2 * num_actions]
    return mean, log_std


def init_params(key, num_inputs, num_actions, hidden_size, init_w=0.003,
                dtype=jnp.float32):
    """Init mirroring PyTorch defaults (uniform +/- 1/sqrt(fan_in)) and the
    explicit uniform(-init_w, init_w) heads. The two heads are fused ONCE here
    into a single lane-dense (hidden, 128) weight slab + bias."""
    ks = jax.random.split(key, 8)

    def unif(k, shape, bound):
        return jax.random.uniform(k, shape, jnp.float32, -bound, bound)

    bnd1 = float(num_inputs) ** -0.5
    bnd2 = float(hidden_size) ** -0.5

    w1 = unif(ks[0], (num_inputs, hidden_size), bnd1)
    b1 = unif(ks[1], (1, hidden_size), bnd1)
    w2 = unif(ks[2], (hidden_size, hidden_size), bnd2)
    b2 = unif(ks[3], (1, hidden_size), bnd2)
    wm = unif(ks[4], (hidden_size, num_actions), init_w)
    bm = unif(ks[5], (1, num_actions), init_w)
    ws = unif(ks[6], (hidden_size, num_actions), init_w)
    bs = unif(ks[7], (1, num_actions), init_w)

    out_w = _round_up(2 * num_actions, _LANES)
    wh = jnp.zeros((hidden_size, out_w), jnp.float32)
    wh = wh.at[:, :num_actions].set(wm)
    wh = wh.at[:, num_actions:2 * num_actions].set(ws)
    bh = jnp.zeros((1, out_w), jnp.float32)
    bh = bh.at[:, :num_actions].set(bm)
    bh = bh.at[:, num_actions:2 * num_actions].set(bs)

    return tuple(p.astype(dtype) for p in (w1, b1, w2, b2, wh, bh))


def _reference_forward(state, params, num_actions):
    w1, b1, w2, b2, wh, bh = [p.astype(jnp.float32) for p in params]
    x = state.astype(jnp.float32)
    h1 = jnp.maximum(x @ w1 + b1, 0.0)
    h2 = jnp.maximum(h1 @ w2 + b2, 0.0)
    head = h2 @ wh + bh
    mean = head[:, :num_actions]
    log_std = jnp.clip(head[:, num_actions:2 * num_actions],
                       LOG_STD_MIN, LOG_STD_MAX)
    return mean, log_std


if __name__ == "__main__":
    num_inputs, num_actions, hidden_size = 8, 4, 32
    batch = 2

    key = jax.random.PRNGKey(0)
    k_params, k_state = jax.random.split(key)

    state = jax.random.normal(k_state, (batch, num_inputs), jnp.float32)

    # --- f32 parameters: strict check --------------------------------------
    params_f32 = init_params(k_params, num_inputs, num_actions, hidden_size)
    mean, log_std = policy_network_forward(state, params_f32,
                                           num_actions=num_actions)
    jax.block_until_ready((mean, log_std))

    mean_ref, log_std_ref = _reference_forward(state, params_f32, num_actions)
    assert mean.shape == (batch, num_actions)
    assert log_std.shape == (batch, num_actions)
    assert jnp.allclose(mean, mean_ref, atol=1e-5, rtol=1e-5)
    assert jnp.allclose(log_std, log_std_ref, atol=1e-5, rtol=1e-5)

    # --- bf16 parameters (f32 MXU accumulation): loose-tolerance check -----
    params_bf16 = init_params(k_params, num_inputs, num_actions, hidden_size,
                              dtype=jnp.bfloat16)
    mean_b, log_std_b = policy_network_forward(state, params_bf16,
                                               num_actions=num_actions)
    jax.block_until_ready((mean_b, log_std_b))
    mean_bref, log_std_bref = _reference_forward(state, params_bf16, num_actions)
    assert jnp.allclose(mean_b, mean_bref, atol=5e-2, rtol=5e-2)
    assert jnp.allclose(log_std_b, log_std_bref, atol=5e-2, rtol=5e-2)

    print("KERNEL_OK")
</pallas_src>

<mosaic_0001>
module attributes {stable_mosaic.version = 11 : i64} {
  func.func @_policy_kernel(%arg0: i32, %arg1: memref<8x8xf32, #tpu.memory_space<vmem>>, %arg2: memref<8x32xf32, #tpu.memory_space<vmem>>, %arg3: memref<1x32xf32, #tpu.memory_space<vmem>>, %arg4: memref<32x32xf32, #tpu.memory_space<vmem>>, %arg5: memref<1x32xf32, #tpu.memory_space<vmem>>, %arg6: memref<32x128xf32, #tpu.memory_space<vmem>>, %arg7: memref<1x128xf32, #tpu.memory_space<vmem>>, %arg8: memref<8x128xf32, #tpu.memory_space<vmem>>) attributes {dimension_semantics = [#tpu.dimension_semantics<parallel>], iteration_bounds = array<i64: 1>, scalar_prefetch = 0 : i64, scratch_operands = 0 : i64, tpu.core_type = #tpu.core_type<tc>, window_params = [{transform_indices = @transform_0, window_bounds = array<i64: 8, 8>}, {pipeline_mode = #tpu.pipeline_mode<synchronous>, transform_indices = @transform_1, window_bounds = array<i64: 8, 32>}, {pipeline_mode = #tpu.pipeline_mode<synchronous>, transform_indices = @transform_2, window_bounds = array<i64: 1, 32>}, {pipeline_mode = #tpu.pipeline_mode<synchronous>, transform_indices = @transform_3, window_bounds = array<i64: 32, 32>}, {pipeline_mode = #tpu.pipeline_mode<synchronous>, transform_indices = @transform_4, window_bounds = array<i64: 1, 32>}, {pipeline_mode = #tpu.pipeline_mode<synchronous>, transform_indices = @transform_5, window_bounds = array<i64: 32, 128>}, {pipeline_mode = #tpu.pipeline_mode<synchronous>, transform_indices = @transform_6, window_bounds = array<i64: 1, 128>}, {transform_indices = @transform_7, window_bounds = array<i64: 8, 128>}]} {
    %c0 = arith.constant 0 : index
    %c0_0 = arith.constant 0 : index
    %0 = vector.load %arg1[%c0, %c0_0] : memref<8x8xf32, #tpu.memory_space<vmem>>, vector<8x8xf32>
    %c0_1 = arith.constant 0 : index
    %c0_2 = arith.constant 0 : index
    %1 = vector.load %arg2[%c0_1, %c0_2] : memref<8x32xf32, #tpu.memory_space<vmem>>, vector<8x32xf32>
    %cst = arith.constant dense<0.000000e+00> : vector<8x32xf32>
    %2 = tpu.matmul %0, %1, %cst {dimension_numbers = #tpu.dot_dimension_numbers<[1], [0], [0], [1], [0, 0, 1, 1], [], []>} : vector<8x8xf32>, vector<8x32xf32>, vector<8x32xf32> -> vector<8x32xf32>
    %c0_3 = arith.constant 0 : index
    %c0_4 = arith.constant 0 : index
    %3 = vector.load %arg3[%c0_3, %c0_4] : memref<1x32xf32, #tpu.memory_space<vmem>>, vector<1x32xf32>
    %4 = vector.broadcast %3 : vector<1x32xf32> to vector<8x32xf32>
    %5 = arith.addf %2, %4 : vector<8x32xf32>
    %cst_5 = arith.constant 0.000000e+00 : f32
    %6 = vector.broadcast %cst_5 : f32 to vector<8x32xf32>
    %7 = arith.maximumf %5, %6 : vector<8x32xf32>
    %c0_6 = arith.constant 0 : index
    %c0_7 = arith.constant 0 : index
    %8 = vector.load %arg4[%c0_6, %c0_7] : memref<32x32xf32, #tpu.memory_space<vmem>>, vector<32x32xf32>
    %cst_8 = arith.constant dense<0.000000e+00> : vector<8x32xf32>
    %9 = tpu.matmul %7, %8, %cst_8 {dimension_numbers = #tpu.dot_dimension_numbers<[1], [0], [0], [1], [0, 0, 1, 1], [], []>} : vector<8x32xf32>, vector<32x32xf32>, vector<8x32xf32> -> vector<8x32xf32>
    %c0_9 = arith.constant 0 : index
    %c0_10 = arith.constant 0 : index
    %10 = vector.load %arg5[%c0_9, %c0_10] : memref<1x32xf32, #tpu.memory_space<vmem>>, vector<1x32xf32>
    %11 = vector.broadcast %10 : vector<1x32xf32> to vector<8x32xf32>
    %12 = arith.addf %9, %11 : vector<8x32xf32>
    %cst_11 = arith.constant 0.000000e+00 : f32
    %13 = vector.broadcast %cst_11 : f32 to vector<8x32xf32>
    %14 = arith.maximumf %12, %13 : vector<8x32xf32>
    %c0_12 = arith.constant 0 : index
    %c0_13 = arith.constant 0 : index
    %15 = vector.load %arg6[%c0_12, %c0_13] : memref<32x128xf32, #tpu.memory_space<vmem>>, vector<32x128xf32>
    %cst_14 = arith.constant dense<0.000000e+00> : vector<8x128xf32>
    %16 = tpu.matmul %14, %15, %cst_14 {dimension_numbers = #tpu.dot_dimension_numbers<[1], [0], [0], [1], [0, 0, 1, 1], [], []>} : vector<8x32xf32>, vector<32x128xf32>, vector<8x128xf32> -> vector<8x128xf32>
    %c0_15 = arith.constant 0 : index
    %c0_16 = arith.constant 0 : index
    %17 = vector.load %arg7[%c0_15, %c0_16] : memref<1x128xf32, #tpu.memory_space<vmem>>, vector<1x128xf32>
    %18 = vector.broadcast %17 : vector<1x128xf32> to vector<8x128xf32>
    %19 = arith.addf %16, %18 : vector<8x128xf32>
    %20 = tpu.iota {dimensions = array<i32: 1>} : vector<8x128xi32>
    %c4_i32 = arith.constant 4 : i32
    %21 = vector.broadcast %c4_i32 : i32 to vector<8x128xi32>
    %22 = arith.cmpi sge, %20, %21 : vector<8x128xi32>
    %c8_i32 = arith.constant 8 : i32
    %23 = vector.broadcast %c8_i32 : i32 to vector<8x128xi32>
    %24 = arith.cmpi slt, %20, %23 : vector<8x128xi32>
    %25 = arith.andi %22, %24 : vector<8x128xi1>
    %cst_17 = arith.constant -2.000000e+01 : f32
    %cst_18 = arith.constant 2.000000e+00 : f32
    %26 = vector.broadcast %cst_17 : f32 to vector<8x128xf32>
    %27 = arith.maximumf %26, %19 : vector<8x128xf32>
    %28 = vector.broadcast %cst_18 : f32 to vector<8x128xf32>
    %29 = arith.minimumf %28, %27 : vector<8x128xf32>
    %30 = arith.select %25, %29, %19 : vector<8x128xi1>, vector<8x128xf32>
    %c0_19 = arith.constant 0 : index
    %c0_20 = arith.constant 0 : index
    %31 = vector.load %arg8[%c0_19, %c0_20] : memref<8x128xf32, #tpu.memory_space<vmem>>, vector<8x128xf32>
    tpu.vector_store %arg8[%c0_19, %c0_20], %30 {strides = array<i32>} : memref<8x128xf32, #tpu.memory_space<vmem>>, vector<8x128xf32>,
    return
  }
  func.func @transform_0(%arg0: i32) -> (i32, i32) {
    %c0_i32 = arith.constant 0 : i32
    %c0_i32_0 = arith.constant 0 : i32
    return %arg0, %c0_i32 : i32, i32
  }
  func.func @transform_1(%arg0: i32) -> (i32, i32) {
    %c0_i32 = arith.constant 0 : i32
    %c0_i32_0 = arith.constant 0 : i32
    %c0_i32_1 = arith.constant 0 : i32
    return %c0_i32, %c0_i32_0 : i32, i32
  }
  func.func @transform_2(%arg0: i32) -> (i32, i32) {
    %c0_i32 = arith.constant 0 : i32
    %c0_i32_0 = arith.constant 0 : i32
    %c0_i32_1 = arith.constant 0 : i32
    return %c0_i32, %c0_i32_0 : i32, i32
  }
  func.func @transform_3(%arg0: i32) -> (i32, i32) {
    %c0_i32 = arith.constant 0 : i32
    %c0_i32_0 = arith.constant 0 : i32
    %c0_i32_1 = arith.constant 0 : i32
    return %c0_i32, %c0_i32_0 : i32, i32
  }
  func.func @transform_4(%arg0: i32) -> (i32, i32) {
    %c0_i32 = arith.constant 0 : i32
    %c0_i32_0 = arith.constant 0 : i32
    %c0_i32_1 = arith.constant 0 : i32
    return %c0_i32, %c0_i32_0 : i32, i32
  }
  func.func @transform_5(%arg0: i32) -> (i32, i32) {
    %c0_i32 = arith.constant 0 : i32
    %c0_i32_0 = arith.constant 0 : i32
    %c0_i32_1 = arith.constant 0 : i32
    return %c0_i32, %c0_i32_0 : i32, i32
  }
  func.func @transform_6(%arg0: i32) -> (i32, i32) {
    %c0_i32 = arith.constant 0 : i32
    %c0_i32_0 = arith.constant 0 : i32
    %c0_i32_1 = arith.constant 0 : i32
    return %c0_i32, %c0_i32_0 : i32, i32
  }
  func.func @transform_7(%arg0: i32) -> (i32, i32) {
    %c0_i32 = arith.constant 0 : i32
    %c0_i32_0 = arith.constant 0 : i32
    return %arg0, %c0_i32 : i32, i32
  }
}

</mosaic_0001>

<llo_original>
// kernel: policy_network_forward.1
$region0: #{policy_network_forward.1}
  #allocation0 [shape = 'u32[]', space=smem, size = 0x4, offset = 0x4, fixed_abs, tag = 'smem constant byte address 0x4 - core index']
  #allocation1 [shape = 'u32[72,128]{1,0:T(1,128)}', space=vmem, size = 0x9000, scoped, tag = 'internal scratch']
  %s0 = inlined_call_operand.vmem [shape: f32[8,8], index: 0, kind: input, shape index: {}]
  %s1 = inlined_call_operand.vmem [shape: f32[8,32], index: 1, kind: input, shape index: {}]
  %s2 = inlined_call_operand.vmem [shape: f32[1,32], index: 2, kind: input, shape index: {}]
  %s3 = inlined_call_operand.hbm [shape: f32[32,32], index: 3, kind: input, shape index: {}]
  %s4 = inlined_call_operand.vmem [shape: f32[1,32], index: 4, kind: input, shape index: {}]
  %s5 = inlined_call_operand.hbm [shape: f32[32,128], index: 5, kind: input, shape index: {}]
  %s6 = inlined_call_operand.vmem [shape: f32[1,128], index: 6, kind: input, shape index: {}]
  %s7 = inlined_call_operand.vmem [shape: f32[8,128], index: 7, kind: output, shape index: {}]
  %s8 = sld [smem:[#allocation0]]
  $region46: #{policy_network_forward.1} parent=0
    _
  %s10 = ssub.s32 1, %s8
  %s11 = scalar_select 0, %s10, %s8
  $region1: #{policy_network_forward.1} parent=0
    #allocation2 [shape = 'u8[16384]{0}', space=vmem, size = 0x4000, scoped, tag = 'input window, operand 3, single buffered']
    #allocation3 [shape = 's32[1]{0}', space=sflag, size = 0x4, scoped, tag = 'scoped memory for policy_network_forward.1']
    #allocation4 [shape = 'u8[16384]{0}', space=vmem, size = 0x4000, scoped, tag = 'input window, operand 5, single buffered']
    #allocation5 [shape = 's32[1]{0}', space=sflag, size = 0x4, scoped, tag = 'scoped memory for policy_network_forward.1']
    %12 = vsyncpa [#allocation3], 0
    %13 = vsyncpa [#allocation5], 0
    // Predicated region
    $region2: #{policy_network_forward.1} parent=1 // pred_check
      _
    $region3: #{policy_network_forward.1} parent=1 // pred_check_branch
      %15 = sbr.rel (0) target = $region5
    $region4: #{policy_network_forward.1} parent=1 // pred_region
      _
    $region5: #{policy_network_forward.1} parent=1 // pred_fallthru
      _
    // Predicated region
    $region6: #{policy_network_forward.1} parent=1 // pred_check
      _
    $region7: #{policy_network_forward.1} parent=1 // pred_check_branch
      %17 = sbr.rel (0) target = $region9
    $region8: #{policy_network_forward.1} parent=1 // pred_region
      _
    $region9: #{policy_network_forward.1} parent=1 // pred_fallthru
      _
    // Predicated region
    $region10: #{policy_network_forward.1} parent=1 // pred_check
      _
    $region11: #{policy_network_forward.1} parent=1 // pred_check_branch
      %19 = sbr.rel (0) target = $region13
    $region12: #{policy_network_forward.1} parent=1 // pred_region
      _
    $region13: #{policy_network_forward.1} parent=1 // pred_fallthru
      _
    // Predicated region
    $region14: #{policy_network_forward.1} parent=1 // pred_check
      _
    $region15: #{policy_network_forward.1} parent=1 // pred_check_branch
      %21 = sbr.rel (0) target = $region17
    $region16: #{policy_network_forward.1} parent=1 // pred_region
      %23 = vsyncadd [#allocation3], 0
      %s24 = sshll.u32 %s3, 4
      %s25 = int_to_ptr.hbm [resolvable:$true] %s24
      %s26 = sshll.u32 [#allocation2], 4
      %s27 = int_to_ptr.vmem [resolvable:$true] %s26
      %32 = dma.hbm_to_vmem [thread:$0]  %s25, 512, %s27, [#allocation3], 128, 128, 8
    $region17: #{policy_network_forward.1} parent=1 // pred_fallthru
      _
    // Predicated region
    $region18: #{policy_network_forward.1} parent=1 // pred_check
      _
    $region19: #{policy_network_forward.1} parent=1 // pred_check_branch
      %34 = sbr.rel (0) target = $region21
    $region20: #{policy_network_forward.1} parent=1 // pred_region
      _
    $region21: #{policy_network_forward.1} parent=1 // pred_fallthru
      _
    // Predicated region
    $region22: #{policy_network_forward.1} parent=1 // pred_check
      _
    $region23: #{policy_network_forward.1} parent=1 // pred_check_branch
      %36 = sbr.rel (0) target = $region25
    $region24: #{policy_network_forward.1} parent=1 // pred_region
      %38 = vsyncadd [#allocation5], 0
      %s39 = sshll.u32 %s5, 4
      %s40 = int_to_ptr.hbm [resolvable:$true] %s39
      %s41 = sshll.u32 [#allocation4], 4
      %s42 = int_to_ptr.vmem [resolvable:$true] %s41
      %47 = dma.hbm_to_vmem [thread:$0]  %s40, 512, %s42, [#allocation5], 128, 128, 8
    $region25: #{policy_network_forward.1} parent=1 // pred_fallthru
      _
    // Predicated region
    $region26: #{policy_network_forward.1} parent=1 // pred_check
      _
    $region27: #{policy_network_forward.1} parent=1 // pred_check_branch
      %49 = sbr.rel (0) target = $region29
    $region28: #{policy_network_forward.1} parent=1 // pred_region
      _
    $region29: #{policy_network_forward.1} parent=1 // pred_fallthru
      _
    // Predicated region
    $region30: #{policy_network_forward.1} parent=1 // pred_check
      _
    $region31: #{policy_network_forward.1} parent=1 // pred_check_branch
      %51 = sbr.rel (0) target = $region33
    $region32: #{policy_network_forward.1} parent=1 // pred_region
      %53 = dma.done [#allocation3], 512
    $region33: #{policy_network_forward.1} parent=1 // pred_fallthru
      _
    // Predicated region
    $region34: #{policy_network_forward.1} parent=1 // pred_check
      _
    $region35: #{policy_network_forward.1} parent=1 // pred_check_branch
      %55 = sbr.rel (0) target = $region37
    $region36: #{policy_network_forward.1} parent=1 // pred_region
      %57 = dma.done [#allocation5], 512
    $region37: #{policy_network_forward.1} parent=1 // pred_fallthru
      _
    %v58 = vld [vmem:[%s0] sm:$0xff]
    %v59 = vld [vmem:[%s1] sm:$0xff]
    %v60 = vld [vmem:[%s2] sm:$0x1]
    %v62 = vperm.slane %v60, 0
    %vm64 = vcmask 64512
    %v66 = vsel %vm64, %v58, 0
    %68 = vmatpush.msra.mxu0 0.0
    %69 = vmatpush.msra.mxu0 0.0
    %70 = vmatpush.msra.mxu0 0.0
    %71 = vmatpush.msra.mxu0 0.0
    %72 = vmatpush.msra.mxu0 0.0
    %73 = vmatpush.msra.mxu0 0.0
    %74 = vmatpush.msra.mxu0 0.0
    %75 = vmatpush.msra.mxu0 0.0
    %76 = vmatpush.msra.mxu0 0.0
    %77 = vmatpush.msra.mxu0 0.0
    %78 = vmatpush.msra.mxu0 0.0
    %79 = vmatpush.msra.mxu0 0.0
    %80 = vmatpush.msra.mxu0 0.0
    %81 = vmatpush.msra.mxu0 0.0
    %82 = vmatpush.msra.mxu0 0.0
    %83 = vmatpush.msra.mxu0 %v59
    %84 = vmatmul.f32.gmra.mxu0 %v66
    %v85 = vpop.f32.mrf.mxu0
    %v86 = vadd.f32 %v62, %v85
    %87 = vdwg.mxu0
    %v88 = vmax.f32 %v86, 0.0
    %v89 = vld [vmem:[#allocation2] sm:$0xff]
    %v90 = vld [vmem:[#allocation2 + $0x8] sm:$0xff]
    %v91 = vld [vmem:[#allocation2 + $0x10] sm:$0xff]
    %v92 = vld [vmem:[#allocation2 + $0x18] sm:$0xff]
    %v93 = vld [vmem:[%s4] sm:$0x1]
    %v95 = vperm.slane %v93, 0
    %vm97 = vcmask 261120
    %v99 = vsel %vm97, %v88, 0
    %101 = vmatpush.msra.mxu0 0.0
    %102 = vmatpush.msra.mxu0 0.0
    %103 = vmatpush.msra.mxu0 0.0
    %104 = vmatpush.msra.mxu0 0.0
    %105 = vmatpush.msra.mxu0 0.0
    %106 = vmatpush.msra.mxu0 0.0
    %107 = vmatpush.msra.mxu0 0.0
    %108 = vmatpush.msra.mxu0 0.0
    %109 = vmatpush.msra.mxu0 0.0
    %110 = vmatpush.msra.mxu0 0.0
    %111 = vmatpush.msra.mxu0 0.0
    %112 = vmatpush.msra.mxu0 0.0
    %113 = vmatpush.msra.mxu0 %v92
    %114 = vmatpush.msra.mxu0 %v91
    %115 = vmatpush.msra.mxu0 %v90
    %116 = vmatpush.msra.mxu0 %v89
    %117 = vmatmul.f32.gmra.mxu0 %v99
    %v118 = vpop.f32.mrf.mxu0
    %v119 = vadd.f32 %v95, %v118
    %120 = vdwg.mxu0
    %v121 = vmax.f32 %v119, 0.0
    %v122 = vld [vmem:[#allocation4] sm:$0xff]
    %v123 = vld [vmem:[#allocation4 + $0x8] sm:$0xff]
    %v124 = vld [vmem:[#allocation4 + $0x10] sm:$0xff]
    %v125 = vld [vmem:[#allocation4 + $0x18] sm:$0xff]
    %v126 = vld [vmem:[%s6] sm:$0x1]
    %v128 = vperm.slane %v126, 0
    %v131 = vsel %vm97, %v121, 0
    %133 = vmatpush.msra.mxu0 0.0
    %134 = vmatpush.msra.mxu0 0.0
    %135 = vmatpush.msra.mxu0 0.0
    %136 = vmatpush.msra.mxu0 0.0
    %137 = vmatpush.msra.mxu0 0.0
    %138 = vmatpush.msra.mxu0 0.0
    %139 = vmatpush.msra.mxu0 0.0
    %140 = vmatpush.msra.mxu0 0.0
    %141 = vmatpush.msra.mxu0 0.0
    %142 = vmatpush.msra.mxu0 0.0
    %143 = vmatpush.msra.mxu0 0.0
    %144 = vmatpush.msra.mxu0 0.0
    %145 = vmatpush.msra.mxu0 %v125
    %146 = vmatpush.msra.mxu0 %v124
    %147 = vmatpush.msra.mxu0 %v123
    %148 = vmatpush.msra.mxu0 %v122
    %149 = vmatmul.f32.gmra.mxu0 %v131
    %v150 = vpop.f32.mrf.mxu0
    %v151 = vadd.f32 %v128, %v150
    %152 = vdwg.mxu0
    %v153 = vlaneseq
    %v154 = vand.u32 %v153, 127
    %vm155 = vcmp.ge.s32.totalorder %v154, 4
    %vm156 = vcmp.lt.s32.totalorder %v154, 8
    %vm157 = vmand %vm155, %vm156
    %v158 = vmax.f32 %v151, -20.0
    %v159 = vmin.f32 %v158, 2.0
    %v160 = vsel %vm157, %v159, %v151
    %161 = vst [vmem:[%s7] sm:$0xff] %v160
    // Predicated region
    $region38: #{policy_network_forward.1} parent=1 // pred_check
      _
    $region39: #{policy_network_forward.1} parent=1 // pred_check_branch
      %163 = sbr.rel (0) target = $region41
    $region40: #{policy_network_forward.1} parent=1 // pred_region
      _
    $region41: #{policy_network_forward.1} parent=1 // pred_fallthru
      _
    // Predicated region
    $region42: #{policy_network_forward.1} parent=1 // pred_check
      _
    $region43: #{policy_network_forward.1} parent=1 // pred_check_branch
      %165 = sbr.rel (0) target = $region45
    $region44: #{policy_network_forward.1} parent=1 // pred_region
      _
    $region45: #{policy_network_forward.1} parent=1 // pred_fallthru
      _
    %166 = vsyncpa [#allocation3], 1
    %167 = vsyncpa [#allocation5], 1

</llo_original>
